<compile_context>
chip_gen: v6e
topology: v6e:2x2x1
jax: 0.10.0
libtpu: 0.0.40
codegen_flags: <defaults>
</compile_context>

<pallas_src>
import functools

import jax
import jax.numpy as jnp
from jax import lax
from jax.experimental import pallas as pl
from jax.experimental.pallas import tpu as pltpu

_VMEM_LIMIT = 64 * 1024 * 1024


def _round_up(n, m):
    return ((n + m - 1) // m) * m


def _pick_t_chunk(T, max_chunk=64):
    """Chunk size no longer needs to divide T (tail is masked)."""
    return max(1, min(T, max_chunk))


# ----------------------------------------------------------------------------
# Fused GRU layer kernel: per time-chunk it
#   (a) computes gi = x_chunk @ W_ih^T(+bias) with one (t_chunk*B, 3H) matmul,
#   (b) runs the recurrence with a single (H, 3H) hidden matmul per step.
# Hidden state is carried in the resident hT output block across time chunks.
# ----------------------------------------------------------------------------
def _gru_layer_kernel(x_ref, w_ih_ref, w_hh_ref, b_i_ref, b_hn_ref, h0_ref,
                      y_ref, hT_ref, gi_ref, *, t_chunk, t_valid, hidden,
                      mask_tail):
    c = pl.program_id(1)          # time-chunk index ('arbitrary' axis)
    H = hidden
    B = y_ref.shape[1]            # batch tile (padded to a multiple of 8)

    @pl.when(c == 0)
    def _():
        hT_ref[...] = h0_ref[...]

    # Grid-resident fused weights (bf16).
    w_ih = w_ih_ref[...]                                   # (I, 3H)
    w_hh = w_hh_ref[...]                                   # (H, 3H)
    # Hoisted broadcast of the n-gate hidden bias (JAX does not CSE this).
    b_hn_b = jnp.broadcast_to(b_hn_ref[...], (B, H))       # (B, H) f32

    # (a) Chunk-wide fused input projection -> VMEM scratch.
    #     b_i already contains b_ih_{r,z,n} with b_hh_{r,z} folded in.
    x = x_ref[...].astype(jnp.bfloat16).reshape(t_chunk * B, -1)
    gi = jnp.dot(x, w_ih, preferred_element_type=jnp.float32) + b_i_ref[...]
    gi_ref[...] = gi.reshape(t_chunk, B, 3 * H)

    # (b) Sequential recurrence over the chunk.
    def step(i, h):
        g = gi_ref[i]                                      # (B, 3H) f32
        gh = jnp.dot(h.astype(jnp.bfloat16), w_hh,
                     preferred_element_type=jnp.float32)   # (B, 3H) f32
        r = jax.nn.sigmoid(g[:, 0:H] + gh[:, 0:H])
        z = jax.nn.sigmoid(g[:, H:2 * H] + gh[:, H:2 * H])
        n = jnp.tanh(g[:, 2 * H:] + r * (gh[:, 2 * H:] + b_hn_b))
        h_new = (1.0 - z) * n + z * h
        if mask_tail:
            # Padded tail timesteps must not update the carried hidden state.
            h_new = jnp.where(c * t_chunk + i < t_valid, h_new, h)
        y_ref[i] = h_new
        return h_new

    h_final = lax.fori_loop(0, t_chunk, step, hT_ref[...],
                            unroll=min(t_chunk, 4))
    hT_ref[...] = h_final


def gru_layer(x_pad, w_ih_t, w_hh_t, b_i, b_hn, h0_pad, t_chunk, t_valid):
    """x_pad: (T_pad, B_pad, I) f32; returns (y (T_pad,B_pad,H), h_T (B_pad,H))."""
    T_pad, B_pad, I = x_pad.shape
    H = w_hh_t.shape[0]
    assert T_pad % t_chunk == 0 and B_pad % 8 == 0

    # Batch tile: split across batch when big enough so v7x's 2 TensorCores can
    # both work (time axis is inherently sequential); harmless on v5e/v6e.
    if B_pad >= 16 and (B_pad // 2) % 8 == 0:
        b_tile = B_pad // 2
    else:
        b_tile = B_pad
    n_b = B_pad // b_tile
    n_c = T_pad // t_chunk

    kernel = functools.partial(_gru_layer_kernel, t_chunk=t_chunk,
                               t_valid=t_valid, hidden=H,
                               mask_tail=(t_valid != T_pad))
    y_spec = pl.BlockSpec((t_chunk, b_tile, H), lambda b, c: (c, b, 0))

    y, h_last = pl.pallas_call(
        kernel,
        out_shape=(jax.ShapeDtypeStruct((T_pad, B_pad, H), jnp.float32),
                   jax.ShapeDtypeStruct((B_pad, H), jnp.float32)),
        grid_spec=pltpu.PrefetchScalarGridSpec(
            num_scalar_prefetch=0,
            grid=(n_b, n_c),
            in_specs=[
                pl.BlockSpec((t_chunk, b_tile, I), lambda b, c: (c, b, 0)),  # x
                pl.BlockSpec((I, 3 * H), lambda b, c: (0, 0)),   # W_ih^T (bf16)
                pl.BlockSpec((H, 3 * H), lambda b, c: (0, 0)),   # W_hh^T (bf16)
                pl.BlockSpec((1, 3 * H), lambda b, c: (0, 0)),   # fused input bias
                pl.BlockSpec((1, H), lambda b, c: (0, 0)),       # b_hh_n
                pl.BlockSpec((b_tile, H), lambda b, c: (b, 0)),  # h0
            ],
            out_specs=[
                y_spec,                                          # y chunk
                pl.BlockSpec((b_tile, H), lambda b, c: (b, 0)),  # h_T (resident)
            ],
            scratch_shapes=[pltpu.VMEM((t_chunk, b_tile, 3 * H), jnp.float32)],
        ),
        compiler_params=pltpu.CompilerParams(
            dimension_semantics=("parallel", "arbitrary"),
            vmem_limit_bytes=_VMEM_LIMIT),
    )(x_pad, w_ih_t, w_hh_t, b_i, b_hn, h0_pad)
    return y, h_last


# ----------------------------------------------------------------------------
# Final Linear: y = x @ W^T + b, row-tiled, bf16 weight, lane-dense (O padded
# to a multiple of 128 inside the kernel, sliced outside).
# ----------------------------------------------------------------------------
def _linear_kernel(x_ref, w_ref, b_ref, o_ref):
    o_ref[...] = (jnp.dot(x_ref[...].astype(jnp.bfloat16), w_ref[...],
                          preferred_element_type=jnp.float32) + b_ref[...])


def linear_rows(x2d, w_t_bf16, b_row, tile_rows=512):
    N, K = x2d.shape
    O_pad = w_t_bf16.shape[1]
    tr = min(tile_rows, N)
    N_pad = _round_up(N, tr)
    if N_pad != N:
        x2d = jnp.pad(x2d, ((0, N_pad - N), (0, 0)))
    out = pl.pallas_call(
        _linear_kernel,
        out_shape=jax.ShapeDtypeStruct((N_pad, O_pad), jnp.float32),
        grid_spec=pltpu.PrefetchScalarGridSpec(
            num_scalar_prefetch=0,
            grid=(N_pad // tr,),
            in_specs=[
                pl.BlockSpec((tr, K), lambda i: (i, 0)),
                pl.BlockSpec((K, O_pad), lambda i: (0, 0)),
                pl.BlockSpec((1, O_pad), lambda i: (0, 0)),
            ],
            out_specs=pl.BlockSpec((tr, O_pad), lambda i: (i, 0)),
        ),
        compiler_params=pltpu.CompilerParams(
            dimension_semantics=("parallel",),
            vmem_limit_bytes=_VMEM_LIMIT),
    )(x2d, w_t_bf16, b_row)
    return out[:N]


# ----------------------------------------------------------------------------
# Weight preprocessing (outside the kernels): fuse gates, transpose, bf16-cast.
# PyTorch GRU layout: W_ih (3H, I), W_hh (3H, H), gate order [r, z, n].
# ----------------------------------------------------------------------------
def prepare_kernel_weights(weights):
    H = weights["hidden_size"]
    L = weights["num_layers"]
    p = {"num_layers": L, "hidden_size": H}
    for l in range(L):
        w_ih = weights[f"w_ih_l{l}"]
        w_hh = weights[f"w_hh_l{l}"]
        b_ih = weights[f"b_ih_l{l}"]
        b_hh = weights[f"b_hh_l{l}"]
        # Fused, pre-transposed weights: columns stay in [r | z | n] order.
        p[f"w_ih_t_l{l}"] = w_ih.T.astype(jnp.bfloat16)    # (I, 3H)
        p[f"w_hh_t_l{l}"] = w_hh.T.astype(jnp.bfloat16)    # (H, 3H)
        # r/z gates are additive in both biases -> fold b_hh into the fused
        # input bias; b_hh_n stays separate (multiplied by the reset gate).
        b_i = jnp.concatenate([b_ih[0:H] + b_hh[0:H],
                               b_ih[H:2 * H] + b_hh[H:2 * H],
                               b_ih[2 * H:3 * H]])
        p[f"b_i_l{l}"] = b_i.reshape(1, 3 * H).astype(jnp.float32)
        p[f"b_hn_l{l}"] = b_hh[2 * H:3 * H].reshape(1, H).astype(jnp.float32)
    O = weights["w_fc"].shape[0]
    O_pad = _round_up(max(O, 1), 128)
    w_fc_t = jnp.pad(weights["w_fc"].T, ((0, 0), (0, O_pad - O)))
    p["w_fc_t"] = w_fc_t.astype(jnp.bfloat16)              # (H, O_pad)
    p["b_fc"] = jnp.pad(weights["b_fc"], (0, O_pad - O)).reshape(1, O_pad)
    p["output_size"] = O
    return p


# ----------------------------------------------------------------------------
# Full GRUModel forward: stacked GRU (batch_first) followed by Linear.
# ----------------------------------------------------------------------------
def gru_model_forward(kweights, x_bti, h0=None, t_chunk=None):
    """x_bti: (B, T, input_size). Returns ((B, T, output_size), (L, B, H))."""
    B, T, _ = x_bti.shape
    L = kweights["num_layers"]
    H = kweights["hidden_size"]
    O = kweights["output_size"]
    if t_chunk is None:
        t_chunk = _pick_t_chunk(T)
    t_chunk = max(1, min(t_chunk, T))
    T_pad = _round_up(T, t_chunk)
    B_pad = _round_up(B, 8)      # dense sublanes: avoid B<8 padding waste

    if h0 is None:
        h0 = jnp.zeros((L, B, H), jnp.float32)
    h0_pad = jnp.pad(h0.astype(jnp.float32),
                     ((0, 0), (0, B_pad - B), (0, 0)))

    x = jnp.transpose(x_bti.astype(jnp.float32), (1, 0, 2))   # time-major
    x = jnp.pad(x, ((0, T_pad - T), (0, B_pad - B), (0, 0)))  # (T_pad,B_pad,I)

    h_finals = []
    for l in range(L):
        x, h_last = gru_layer(
            x,
            kweights[f"w_ih_t_l{l}"], kweights[f"w_hh_t_l{l}"],
            kweights[f"b_i_l{l}"], kweights[f"b_hn_l{l}"],
            h0_pad[l], t_chunk, T)
        h_finals.append(h_last[:B])
    h_n = jnp.stack(h_finals, axis=0)                      # (L, B, H)

    out2d = linear_rows(x.reshape(T_pad * B_pad, H),
                        kweights["w_fc_t"], kweights["b_fc"])
    out = out2d.reshape(T_pad, B_pad, -1)[:T, :B, :O]
    out = jnp.transpose(out, (1, 0, 2))                    # (B, T, O)
    return out, h_n


# ----------------------------------------------------------------------------
# Deterministic parameter init (PyTorch-style uniform(-1/sqrt(H), 1/sqrt(H))).
# ----------------------------------------------------------------------------
def init_weights(key, input_size, hidden_size, num_layers, output_size):
    weights = {"num_layers": num_layers, "hidden_size": hidden_size}
    k = 1.0 / jnp.sqrt(hidden_size)
    for layer in range(num_layers):
        in_sz = input_size if layer == 0 else hidden_size
        key, k1, k2, k3, k4 = jax.random.split(key, 5)
        weights[f"w_ih_l{layer}"] = jax.random.uniform(
            k1, (3 * hidden_size, in_sz), jnp.float32, -k, k)
        weights[f"w_hh_l{layer}"] = jax.random.uniform(
            k2, (3 * hidden_size, hidden_size), jnp.float32, -k, k)
        weights[f"b_ih_l{layer}"] = jax.random.uniform(
            k3, (3 * hidden_size,), jnp.float32, -k, k)
        weights[f"b_hh_l{layer}"] = jax.random.uniform(
            k4, (3 * hidden_size,), jnp.float32, -k, k)
    key, k5, k6 = jax.random.split(key, 3)
    weights["w_fc"] = jax.random.uniform(
        k5, (output_size, hidden_size), jnp.float32, -k, k)
    weights["b_fc"] = jax.random.uniform(
        k6, (output_size,), jnp.float32, -k, k)
    return weights


# ----------------------------------------------------------------------------
# Pure-JAX f32 reference (correctness sanity check).
# ----------------------------------------------------------------------------
def _gru_model_ref(weights, x_bti):
    B, T, _ = x_bti.shape
    L, H = weights["num_layers"], weights["hidden_size"]
    x = x_bti
    for layer in range(L):
        w_ih, w_hh = weights[f"w_ih_l{layer}"], weights[f"w_hh_l{layer}"]
        b_ih, b_hh = weights[f"b_ih_l{layer}"], weights[f"b_hh_l{layer}"]
        h = jnp.zeros((B, H), jnp.float32)
        ys = []
        for t in range(T):
            xt = x[:, t, :]
            gi = xt @ w_ih.T + b_ih
            gh = h @ w_hh.T + b_hh
            i_r, i_z, i_n = jnp.split(gi, 3, axis=-1)
            h_r, h_z, h_n = jnp.split(gh, 3, axis=-1)
            r = jax.nn.sigmoid(i_r + h_r)
            z = jax.nn.sigmoid(i_z + h_z)
            n = jnp.tanh(i_n + r * h_n)
            h = (1.0 - z) * n + z * h
            ys.append(h)
        x = jnp.stack(ys, axis=1)
    return x @ weights["w_fc"].T + weights["b_fc"]


if __name__ == "__main__":
    params = dict(input_size=16, hidden_size=32, num_layers=2, output_size=8)
    # T deliberately NOT a multiple of t_chunk -> exercises the masked tail
    # chunk as well as the resident hidden-state carry across time chunks.
    B, T = 2, 18

    key = jax.random.PRNGKey(0)
    key, wkey, xkey = jax.random.split(key, 3)
    weights = init_weights(wkey, params["input_size"], params["hidden_size"],
                           params["num_layers"], params["output_size"])
    kweights = prepare_kernel_weights(weights)
    x = jax.random.normal(xkey, (B, T, params["input_size"]), jnp.float32)

    out, h_n = gru_model_forward(kweights, x, t_chunk=4)
    out = jax.block_until_ready(out)
    h_n = jax.block_until_ready(h_n)

    assert out.shape == (B, T, params["output_size"])
    assert h_n.shape == (params["num_layers"], B, params["hidden_size"])

    ref = _gru_model_ref(weights, x)
    max_err = float(jnp.max(jnp.abs(out - ref)))
    # bf16 MXU operands -> slightly relaxed tolerance vs the f32 reference.
    assert jnp.allclose(out, ref, rtol=5e-2, atol=5e-2), (
        f"mismatch vs reference (max abs err {max_err:.4e})")

    print("KERNEL_OK")
</pallas_src>

<mosaic_0001>
module attributes {stable_mosaic.version = 11 : i64} {
  func.func @_gru_layer_kernel(%arg0: i32, %arg1: i32, %arg2: memref<4x8x16xf32, #tpu.memory_space<vmem>>, %arg3: memref<16x96xbf16, #tpu.memory_space<vmem>>, %arg4: memref<32x96xbf16, #tpu.memory_space<vmem>>, %arg5: memref<1x96xf32, #tpu.memory_space<vmem>>, %arg6: memref<1x32xf32, #tpu.memory_space<vmem>>, %arg7: memref<8x32xf32, #tpu.memory_space<vmem>>, %arg8: memref<4x8x32xf32, #tpu.memory_space<vmem>>, %arg9: memref<8x32xf32, #tpu.memory_space<vmem>>, %arg10: memref<4x8x96xf32, #tpu.memory_space<vmem>>) attributes {dimension_semantics = [#tpu.dimension_semantics<parallel>, #tpu.dimension_semantics<arbitrary>], iteration_bounds = array<i64: 1, 5>, scalar_prefetch = 0 : i64, scratch_operands = 1 : i64, tpu.core_type = #tpu.core_type<tc>, window_params = [{transform_indices = @transform_0, window_bounds = array<i64: 4, 8, 16>}, {pipeline_mode = #tpu.pipeline_mode<synchronous>, transform_indices = @transform_1, window_bounds = array<i64: 16, 96>}, {pipeline_mode = #tpu.pipeline_mode<synchronous>, transform_indices = @transform_2, window_bounds = array<i64: 32, 96>}, {pipeline_mode = #tpu.pipeline_mode<synchronous>, transform_indices = @transform_3, window_bounds = array<i64: 1, 96>}, {pipeline_mode = #tpu.pipeline_mode<synchronous>, transform_indices = @transform_4, window_bounds = array<i64: 1, 32>}, {transform_indices = @transform_5, window_bounds = array<i64: 8, 32>}, {transform_indices = @transform_6, window_bounds = array<i64: 4, 8, 32>}, {transform_indices = @transform_7, window_bounds = array<i64: 8, 32>}]} {
    %c0_i32 = arith.constant 0 : i32
    %0 = arith.cmpi eq, %arg1, %c0_i32 : i32
    %1 = arith.extui %0 : i1 to i32
    %c0_i32_0 = arith.constant 0 : i32
    %2 = arith.cmpi ne, %1, %c0_i32_0 : i32
    scf.if %2 {
      %c0_58 = arith.constant 0 : index
      %c0_59 = arith.constant 0 : index
      %179 = vector.load %arg7[%c0_58, %c0_59] : memref<8x32xf32, #tpu.memory_space<vmem>>, vector<8x32xf32>
      %c0_60 = arith.constant 0 : index
      %c0_61 = arith.constant 0 : index
      %180 = vector.load %arg9[%c0_60, %c0_61] : memref<8x32xf32, #tpu.memory_space<vmem>>, vector<8x32xf32>
      tpu.vector_store %arg9[%c0_60, %c0_61], %179 {strides = array<i32>} : memref<8x32xf32, #tpu.memory_space<vmem>>, vector<8x32xf32>,
    } else {
    }
    %c0 = arith.constant 0 : index
    %c0_1 = arith.constant 0 : index
    %3 = vector.load %arg3[%c0, %c0_1] : memref<16x96xbf16, #tpu.memory_space<vmem>>, vector<16x96xbf16>
    %c0_2 = arith.constant 0 : index
    %c0_3 = arith.constant 0 : index
    %4 = vector.load %arg4[%c0_2, %c0_3] : memref<32x96xbf16, #tpu.memory_space<vmem>>, vector<32x96xbf16>
    %c0_4 = arith.constant 0 : index
    %c0_5 = arith.constant 0 : index
    %5 = vector.load %arg6[%c0_4, %c0_5] : memref<1x32xf32, #tpu.memory_space<vmem>>, vector<1x32xf32>
    %6 = vector.shape_cast %5 : vector<1x32xf32> to vector<1x32xf32>
    %7 = vector.broadcast %6 : vector<1x32xf32> to vector<8x32xf32>
    %c0_6 = arith.constant 0 : index
    %c0_7 = arith.constant 0 : index
    %c0_8 = arith.constant 0 : index
    %8 = vector.load %arg2[%c0_6, %c0_7, %c0_8] : memref<4x8x16xf32, #tpu.memory_space<vmem>>, vector<4x8x16xf32>
    %9 = arith.truncf %8 : vector<4x8x16xf32> to vector<4x8x16xbf16>
    %10 = vector.shape_cast %9 : vector<4x8x16xbf16> to vector<32x16xbf16>
    %cst = arith.constant dense<0.000000e+00> : vector<32x96xf32>
    %11 = tpu.matmul %10, %3, %cst {dimension_numbers = #tpu.dot_dimension_numbers<[1], [0], [0], [1], [0, 0, 1, 1], [], []>} : vector<32x16xbf16>, vector<16x96xbf16>, vector<32x96xf32> -> vector<32x96xf32>
    %c0_9 = arith.constant 0 : index
    %c0_10 = arith.constant 0 : index
    %12 = vector.load %arg5[%c0_9, %c0_10] : memref<1x96xf32, #tpu.memory_space<vmem>>, vector<1x96xf32>
    %13 = vector.broadcast %12 : vector<1x96xf32> to vector<32x96xf32>
    %14 = arith.addf %11, %13 : vector<32x96xf32>
    %15 = vector.shape_cast %14 : vector<32x96xf32> to vector<4x8x96xf32>
    %c0_11 = arith.constant 0 : index
    %c0_12 = arith.constant 0 : index
    %c0_13 = arith.constant 0 : index
    %16 = vector.load %arg10[%c0_11, %c0_12, %c0_13] : memref<4x8x96xf32, #tpu.memory_space<vmem>>, vector<4x8x96xf32>
    tpu.vector_store %arg10[%c0_11, %c0_12, %c0_13], %15 {strides = array<i32>} : memref<4x8x96xf32, #tpu.memory_space<vmem>>, vector<4x8x96xf32>,
    %c0_14 = arith.constant 0 : index
    %c0_15 = arith.constant 0 : index
    %17 = vector.load %arg9[%c0_14, %c0_15] : memref<8x32xf32, #tpu.memory_space<vmem>>, vector<8x32xf32>
    %c0_i32_16 = arith.constant 0 : i32
    %18 = arith.index_cast %c0_i32_16 : i32 to index
    %c0_17 = arith.constant 0 : index
    %c0_18 = arith.constant 0 : index
    %19 = vector.load %arg10[%18, %c0_17, %c0_18] : memref<4x8x96xf32, #tpu.memory_space<vmem>>, vector<1x8x96xf32>
    %20 = vector.shape_cast %19 : vector<1x8x96xf32> to vector<8x96xf32>
    %21 = arith.truncf %17 : vector<8x32xf32> to vector<8x32xbf16>
    %cst_19 = arith.constant dense<0.000000e+00> : vector<8x96xf32>
    %22 = tpu.matmul %21, %4, %cst_19 {dimension_numbers = #tpu.dot_dimension_numbers<[1], [0], [0], [1], [0, 0, 1, 1], [], []>} : vector<8x32xbf16>, vector<32x96xbf16>, vector<8x96xf32> -> vector<8x96xf32>
    %23 = vector.extract_strided_slice %20 {offsets = [0, 0], sizes = [8, 32], strides = [1, 1]} : vector<8x96xf32> to vector<8x32xf32>
    %24 = vector.extract_strided_slice %22 {offsets = [0, 0], sizes = [8, 32], strides = [1, 1]} : vector<8x96xf32> to vector<8x32xf32>
    %25 = arith.addf %23, %24 : vector<8x32xf32>
    %26 = arith.negf %25 : vector<8x32xf32>
    %27 = math.exp %26 : vector<8x32xf32>
    %cst_20 = arith.constant 1.000000e+00 : f32
    %28 = vector.broadcast %cst_20 : f32 to vector<8x32xf32>
    %29 = arith.addf %28, %27 : vector<8x32xf32>
    %30 = arith.divf %28, %29 : vector<8x32xf32>
    %31 = vector.extract_strided_slice %20 {offsets = [0, 32], sizes = [8, 32], strides = [1, 1]} : vector<8x96xf32> to vector<8x32xf32>
    %32 = vector.extract_strided_slice %22 {offsets = [0, 32], sizes = [8, 32], strides = [1, 1]} : vector<8x96xf32> to vector<8x32xf32>
    %33 = arith.addf %31, %32 : vector<8x32xf32>
    %34 = arith.negf %33 : vector<8x32xf32>
    %35 = math.exp %34 : vector<8x32xf32>
    %cst_21 = arith.constant 1.000000e+00 : f32
    %36 = vector.broadcast %cst_21 : f32 to vector<8x32xf32>
    %37 = arith.addf %36, %35 : vector<8x32xf32>
    %38 = arith.divf %36, %37 : vector<8x32xf32>
    %39 = vector.extract_strided_slice %20 {offsets = [0, 64], sizes = [8, 32], strides = [1, 1]} : vector<8x96xf32> to vector<8x32xf32>
    %40 = vector.extract_strided_slice %22 {offsets = [0, 64], sizes = [8, 32], strides = [1, 1]} : vector<8x96xf32> to vector<8x32xf32>
    %41 = arith.addf %40, %7 : vector<8x32xf32>
    %42 = arith.mulf %30, %41 : vector<8x32xf32>
    %43 = arith.addf %39, %42 : vector<8x32xf32>
    %44 = math.tanh %43 : vector<8x32xf32>
    %cst_22 = arith.constant 1.000000e+00 : f32
    %45 = vector.broadcast %cst_22 : f32 to vector<8x32xf32>
    %46 = arith.subf %45, %38 : vector<8x32xf32>
    %47 = arith.mulf %46, %44 : vector<8x32xf32>
    %48 = arith.mulf %38, %17 : vector<8x32xf32>
    %49 = arith.addf %47, %48 : vector<8x32xf32>
    %c4_i32 = arith.constant 4 : i32
    %50 = arith.muli %arg1, %c4_i32 : i32
    %51 = arith.addi %50, %c0_i32_16 : i32
    %c18_i32 = arith.constant 18 : i32
    %52 = arith.cmpi slt, %51, %c18_i32 : i32
    %53 = arith.select %52, %49, %17 : vector<8x32xf32>
    %54 = arith.index_cast %c0_i32_16 : i32 to index
    %c0_23 = arith.constant 0 : index
    %c0_24 = arith.constant 0 : index
    %55 = vector.load %arg8[%54, %c0_23, %c0_24] : memref<4x8x32xf32, #tpu.memory_space<vmem>>, vector<1x8x32xf32>
    %56 = vector.shape_cast %55 : vector<1x8x32xf32> to vector<8x32xf32>
    %57 = vector.shape_cast %53 : vector<8x32xf32> to vector<1x8x32xf32>
    tpu.vector_store %arg8[%54, %c0_23, %c0_24], %57 {strides = array<i32>} : memref<4x8x32xf32, #tpu.memory_space<vmem>>, vector<1x8x32xf32>,
    %c1_i32 = arith.constant 1 : i32
    %58 = arith.index_cast %c1_i32 : i32 to index
    %c0_25 = arith.constant 0 : index
    %c0_26 = arith.constant 0 : index
    %59 = vector.load %arg10[%58, %c0_25, %c0_26] : memref<4x8x96xf32, #tpu.memory_space<vmem>>, vector<1x8x96xf32>
    %60 = vector.shape_cast %59 : vector<1x8x96xf32> to vector<8x96xf32>
    %61 = arith.truncf %53 : vector<8x32xf32> to vector<8x32xbf16>
    %cst_27 = arith.constant dense<0.000000e+00> : vector<8x96xf32>
    %62 = tpu.matmul %61, %4, %cst_27 {dimension_numbers = #tpu.dot_dimension_numbers<[1], [0], [0], [1], [0, 0, 1, 1], [], []>} : vector<8x32xbf16>, vector<32x96xbf16>, vector<8x96xf32> -> vector<8x96xf32>
    %63 = vector.extract_strided_slice %60 {offsets = [0, 0], sizes = [8, 32], strides = [1, 1]} : vector<8x96xf32> to vector<8x32xf32>
    %64 = vector.extract_strided_slice %62 {offsets = [0, 0], sizes = [8, 32], strides = [1, 1]} : vector<8x96xf32> to vector<8x32xf32>
    %65 = arith.addf %63, %64 : vector<8x32xf32>
    %66 = arith.negf %65 : vector<8x32xf32>
    %67 = math.exp %66 : vector<8x32xf32>
    %cst_28 = arith.constant 1.000000e+00 : f32
    %68 = vector.broadcast %cst_28 : f32 to vector<8x32xf32>
    %69 = arith.addf %68, %67 : vector<8x32xf32>
    %70 = arith.divf %68, %69 : vector<8x32xf32>
    %71 = vector.extract_strided_slice %60 {offsets = [0, 32], sizes = [8, 32], strides = [1, 1]} : vector<8x96xf32> to vector<8x32xf32>
    %72 = vector.extract_strided_slice %62 {offsets = [0, 32], sizes = [8, 32], strides = [1, 1]} : vector<8x96xf32> to vector<8x32xf32>
    %73 = arith.addf %71, %72 : vector<8x32xf32>
    %74 = arith.negf %73 : vector<8x32xf32>
    %75 = math.exp %74 : vector<8x32xf32>
    %cst_29 = arith.constant 1.000000e+00 : f32
    %76 = vector.broadcast %cst_29 : f32 to vector<8x32xf32>
    %77 = arith.addf %76, %75 : vector<8x32xf32>
    %78 = arith.divf %76, %77 : vector<8x32xf32>
    %79 = vector.extract_strided_slice %60 {offsets = [0, 64], sizes = [8, 32], strides = [1, 1]} : vector<8x96xf32> to vector<8x32xf32>
    %80 = vector.extract_strided_slice %62 {offsets = [0, 64], sizes = [8, 32], strides = [1, 1]} : vector<8x96xf32> to vector<8x32xf32>
    %81 = arith.addf %80, %7 : vector<8x32xf32>
    %82 = arith.mulf %70, %81 : vector<8x32xf32>
    %83 = arith.addf %79, %82 : vector<8x32xf32>
    %84 = math.tanh %83 : vector<8x32xf32>
    %cst_30 = arith.constant 1.000000e+00 : f32
    %85 = vector.broadcast %cst_30 : f32 to vector<8x32xf32>
    %86 = arith.subf %85, %78 : vector<8x32xf32>
    %87 = arith.mulf %86, %84 : vector<8x32xf32>
    %88 = arith.mulf %78, %53 : vector<8x32xf32>
    %89 = arith.addf %87, %88 : vector<8x32xf32>
    %c4_i32_31 = arith.constant 4 : i32
    %90 = arith.muli %arg1, %c4_i32_31 : i32
    %91 = arith.addi %90, %c1_i32 : i32
    %c18_i32_32 = arith.constant 18 : i32
    %92 = arith.cmpi slt, %91, %c18_i32_32 : i32
    %93 = arith.select %92, %89, %53 : vector<8x32xf32>
    %94 = arith.index_cast %c1_i32 : i32 to index
    %c0_33 = arith.constant 0 : index
    %c0_34 = arith.constant 0 : index
    %95 = vector.load %arg8[%94, %c0_33, %c0_34] : memref<4x8x32xf32, #tpu.memory_space<vmem>>, vector<1x8x32xf32>
    %96 = vector.shape_cast %95 : vector<1x8x32xf32> to vector<8x32xf32>
    %97 = vector.shape_cast %93 : vector<8x32xf32> to vector<1x8x32xf32>
    tpu.vector_store %arg8[%94, %c0_33, %c0_34], %97 {strides = array<i32>} : memref<4x8x32xf32, #tpu.memory_space<vmem>>, vector<1x8x32xf32>,
    %c2_i32 = arith.constant 2 : i32
    %98 = arith.index_cast %c2_i32 : i32 to index
    %c0_35 = arith.constant 0 : index
    %c0_36 = arith.constant 0 : index
    %99 = vector.load %arg10[%98, %c0_35, %c0_36] : memref<4x8x96xf32, #tpu.memory_space<vmem>>, vector<1x8x96xf32>
    %100 = vector.shape_cast %99 : vector<1x8x96xf32> to vector<8x96xf32>
    %101 = arith.truncf %93 : vector<8x32xf32> to vector<8x32xbf16>
    %cst_37 = arith.constant dense<0.000000e+00> : vector<8x96xf32>
    %102 = tpu.matmul %101, %4, %cst_37 {dimension_numbers = #tpu.dot_dimension_numbers<[1], [0], [0], [1], [0, 0, 1, 1], [], []>} : vector<8x32xbf16>, vector<32x96xbf16>, vector<8x96xf32> -> vector<8x96xf32>
    %103 = vector.extract_strided_slice %100 {offsets = [0, 0], sizes = [8, 32], strides = [1, 1]} : vector<8x96xf32> to vector<8x32xf32>
    %104 = vector.extract_strided_slice %102 {offsets = [0, 0], sizes = [8, 32], strides = [1, 1]} : vector<8x96xf32> to vector<8x32xf32>
    %105 = arith.addf %103, %104 : vector<8x32xf32>
    %106 = arith.negf %105 : vector<8x32xf32>
    %107 = math.exp %106 : vector<8x32xf32>
    %cst_38 = arith.constant 1.000000e+00 : f32
    %108 = vector.broadcast %cst_38 : f32 to vector<8x32xf32>
    %109 = arith.addf %108, %107 : vector<8x32xf32>
    %110 = arith.divf %108, %109 : vector<8x32xf32>
    %111 = vector.extract_strided_slice %100 {offsets = [0, 32], sizes = [8, 32], strides = [1, 1]} : vector<8x96xf32> to vector<8x32xf32>
    %112 = vector.extract_strided_slice %102 {offsets = [0, 32], sizes = [8, 32], strides = [1, 1]} : vector<8x96xf32> to vector<8x32xf32>
    %113 = arith.addf %111, %112 : vector<8x32xf32>
    %114 = arith.negf %113 : vector<8x32xf32>
    %115 = math.exp %114 : vector<8x32xf32>
    %cst_39 = arith.constant 1.000000e+00 : f32
    %116 = vector.broadcast %cst_39 : f32 to vector<8x32xf32>
    %117 = arith.addf %116, %115 : vector<8x32xf32>
    %118 = arith.divf %116, %117 : vector<8x32xf32>
    %119 = vector.extract_strided_slice %100 {offsets = [0, 64], sizes = [8, 32], strides = [1, 1]} : vector<8x96xf32> to vector<8x32xf32>
    %120 = vector.extract_strided_slice %102 {offsets = [0, 64], sizes = [8, 32], strides = [1, 1]} : vector<8x96xf32> to vector<8x32xf32>
    %121 = arith.addf %120, %7 : vector<8x32xf32>
    %122 = arith.mulf %110, %121 : vector<8x32xf32>
    %123 = arith.addf %119, %122 : vector<8x32xf32>
    %124 = math.tanh %123 : vector<8x32xf32>
    %cst_40 = arith.constant 1.000000e+00 : f32
    %125 = vector.broadcast %cst_40 : f32 to vector<8x32xf32>
    %126 = arith.subf %125, %118 : vector<8x32xf32>
    %127 = arith.mulf %126, %124 : vector<8x32xf32>
    %128 = arith.mulf %118, %93 : vector<8x32xf32>
    %129 = arith.addf %127, %128 : vector<8x32xf32>
    %c4_i32_41 = arith.constant 4 : i32
    %130 = arith.muli %arg1, %c4_i32_41 : i32
    %131 = arith.addi %130, %c2_i32 : i32
    %c18_i32_42 = arith.constant 18 : i32
    %132 = arith.cmpi slt, %131, %c18_i32_42 : i32
    %133 = arith.select %132, %129, %93 : vector<8x32xf32>
    %134 = arith.index_cast %c2_i32 : i32 to index
    %c0_43 = arith.constant 0 : index
    %c0_44 = arith.constant 0 : index
    %135 = vector.load %arg8[%134, %c0_43, %c0_44] : memref<4x8x32xf32, #tpu.memory_space<vmem>>, vector<1x8x32xf32>
    %136 = vector.shape_cast %135 : vector<1x8x32xf32> to vector<8x32xf32>
    %137 = vector.shape_cast %133 : vector<8x32xf32> to vector<1x8x32xf32>
    tpu.vector_store %arg8[%134, %c0_43, %c0_44], %137 {strides = array<i32>} : memref<4x8x32xf32, #tpu.memory_space<vmem>>, vector<1x8x32xf32>,
    %c3_i32 = arith.constant 3 : i32
    %138 = arith.index_cast %c3_i32 : i32 to index
    %c0_45 = arith.constant 0 : index
    %c0_46 = arith.constant 0 : index
    %139 = vector.load %arg10[%138, %c0_45, %c0_46] : memref<4x8x96xf32, #tpu.memory_space<vmem>>, vector<1x8x96xf32>
    %140 = vector.shape_cast %139 : vector<1x8x96xf32> to vector<8x96xf32>
    %141 = arith.truncf %133 : vector<8x32xf32> to vector<8x32xbf16>
    %cst_47 = arith.constant dense<0.000000e+00> : vector<8x96xf32>
    %142 = tpu.matmul %141, %4, %cst_47 {dimension_numbers = #tpu.dot_dimension_numbers<[1], [0], [0], [1], [0, 0, 1, 1], [], []>} : vector<8x32xbf16>, vector<32x96xbf16>, vector<8x96xf32> -> vector<8x96xf32>
    %143 = vector.extract_strided_slice %140 {offsets = [0, 0], sizes = [8, 32], strides = [1, 1]} : vector<8x96xf32> to vector<8x32xf32>
    %144 = vector.extract_strided_slice %142 {offsets = [0, 0], sizes = [8, 32], strides = [1, 1]} : vector<8x96xf32> to vector<8x32xf32>
    %145 = arith.addf %143, %144 : vector<8x32xf32>
    %146 = arith.negf %145 : vector<8x32xf32>
    %147 = math.exp %146 : vector<8x32xf32>
    %cst_48 = arith.constant 1.000000e+00 : f32
    %148 = vector.broadcast %cst_48 : f32 to vector<8x32xf32>
    %149 = arith.addf %148, %147 : vector<8x32xf32>
    %150 = arith.divf %148, %149 : vector<8x32xf32>
    %151 = vector.extract_strided_slice %140 {offsets = [0, 32], sizes = [8, 32], strides = [1, 1]} : vector<8x96xf32> to vector<8x32xf32>
    %152 = vector.extract_strided_slice %142 {offsets = [0, 32], sizes = [8, 32], strides = [1, 1]} : vector<8x96xf32> to vector<8x32xf32>
    %153 = arith.addf %151, %152 : vector<8x32xf32>
    %154 = arith.negf %153 : vector<8x32xf32>
    %155 = math.exp %154 : vector<8x32xf32>
    %cst_49 = arith.constant 1.000000e+00 : f32
    %156 = vector.broadcast %cst_49 : f32 to vector<8x32xf32>
    %157 = arith.addf %156, %155 : vector<8x32xf32>
    %158 = arith.divf %156, %157 : vector<8x32xf32>
    %159 = vector.extract_strided_slice %140 {offsets = [0, 64], sizes = [8, 32], strides = [1, 1]} : vector<8x96xf32> to vector<8x32xf32>
    %160 = vector.extract_strided_slice %142 {offsets = [0, 64], sizes = [8, 32], strides = [1, 1]} : vector<8x96xf32> to vector<8x32xf32>
    %161 = arith.addf %160, %7 : vector<8x32xf32>
    %162 = arith.mulf %150, %161 : vector<8x32xf32>
    %163 = arith.addf %159, %162 : vector<8x32xf32>
    %164 = math.tanh %163 : vector<8x32xf32>
    %cst_50 = arith.constant 1.000000e+00 : f32
    %165 = vector.broadcast %cst_50 : f32 to vector<8x32xf32>
    %166 = arith.subf %165, %158 : vector<8x32xf32>
    %167 = arith.mulf %166, %164 : vector<8x32xf32>
    %168 = arith.mulf %158, %133 : vector<8x32xf32>
    %169 = arith.addf %167, %168 : vector<8x32xf32>
    %c4_i32_51 = arith.constant 4 : i32
    %170 = arith.muli %arg1, %c4_i32_51 : i32
    %171 = arith.addi %170, %c3_i32 : i32
    %c18_i32_52 = arith.constant 18 : i32
    %172 = arith.cmpi slt, %171, %c18_i32_52 : i32
    %173 = arith.select %172, %169, %133 : vector<8x32xf32>
    %174 = arith.index_cast %c3_i32 : i32 to index
    %c0_53 = arith.constant 0 : index
    %c0_54 = arith.constant 0 : index
    %175 = vector.load %arg8[%174, %c0_53, %c0_54] : memref<4x8x32xf32, #tpu.memory_space<vmem>>, vector<1x8x32xf32>
    %176 = vector.shape_cast %175 : vector<1x8x32xf32> to vector<8x32xf32>
    %177 = vector.shape_cast %173 : vector<8x32xf32> to vector<1x8x32xf32>
    tpu.vector_store %arg8[%174, %c0_53, %c0_54], %177 {strides = array<i32>} : memref<4x8x32xf32, #tpu.memory_space<vmem>>, vector<1x8x32xf32>,
    %c4_i32_55 = arith.constant 4 : i32
    %c0_56 = arith.constant 0 : index
    %c0_57 = arith.constant 0 : index
    %178 = vector.load %arg9[%c0_56, %c0_57] : memref<8x32xf32, #tpu.memory_space<vmem>>, vector<8x32xf32>
    tpu.vector_store %arg9[%c0_56, %c0_57], %173 {strides = array<i32>} : memref<8x32xf32, #tpu.memory_space<vmem>>, vector<8x32xf32>,
    return
  }
  func.func @transform_0(%arg0: i32, %arg1: i32) -> (i32, i32, i32) {
    %c0_i32 = arith.constant 0 : i32
    %c0_i32_0 = arith.constant 0 : i32
    return %arg1, %arg0, %c0_i32 : i32, i32, i32
  }
  func.func @transform_1(%arg0: i32, %arg1: i32) -> (i32, i32) {
    %c0_i32 = arith.constant 0 : i32
    %c0_i32_0 = arith.constant 0 : i32
    %c0_i32_1 = arith.constant 0 : i32
    return %c0_i32, %c0_i32_0 : i32, i32
  }
  func.func @transform_2(%arg0: i32, %arg1: i32) -> (i32, i32) {
    %c0_i32 = arith.constant 0 : i32
    %c0_i32_0 = arith.constant 0 : i32
    %c0_i32_1 = arith.constant 0 : i32
    return %c0_i32, %c0_i32_0 : i32, i32
  }
  func.func @transform_3(%arg0: i32, %arg1: i32) -> (i32, i32) {
    %c0_i32 = arith.constant 0 : i32
    %c0_i32_0 = arith.constant 0 : i32
    %c0_i32_1 = arith.constant 0 : i32
    return %c0_i32, %c0_i32_0 : i32, i32
  }
  func.func @transform_4(%arg0: i32, %arg1: i32) -> (i32, i32) {
    %c0_i32 = arith.constant 0 : i32
    %c0_i32_0 = arith.constant 0 : i32
    %c0_i32_1 = arith.constant 0 : i32
    return %c0_i32, %c0_i32_0 : i32, i32
  }
  func.func @transform_5(%arg0: i32, %arg1: i32) -> (i32, i32) {
    %c0_i32 = arith.constant 0 : i32
    %c0_i32_0 = arith.constant 0 : i32
    return %arg0, %c0_i32 : i32, i32
  }
  func.func @transform_6(%arg0: i32, %arg1: i32) -> (i32, i32, i32) {
    %c0_i32 = arith.constant 0 : i32
    %c0_i32_0 = arith.constant 0 : i32
    return %arg1, %arg0, %c0_i32 : i32, i32, i32
  }
  func.func @transform_7(%arg0: i32, %arg1: i32) -> (i32, i32) {
    %c0_i32 = arith.constant 0 : i32
    %c0_i32_0 = arith.constant 0 : i32
    return %arg0, %c0_i32 : i32, i32
  }
}

</mosaic_0001>

<llo_original>
// kernel: tpu_custom_call.1
$region0: #{tpu_custom_call.1}
  #allocation0 [shape = 'u32[]', space=smem, size = 0x4, offset = 0x4, fixed_abs, tag = 'smem constant byte address 0x4 - core index']
  #allocation1 [shape = 'u32[144,128]{1,0:T(1,128)}', space=vmem, size = 0x12000, scoped, tag = 'internal scratch']
  #allocation2 [shape = 'f32[4,8,96]{2,1,0:T(8,128)}', space=vmem, size = 0x4000, scoped, tag = 'scratch operand']
  %s0 = inlined_call_operand.vmem [shape: f32[20,8,16], index: 0, kind: input, shape index: {}]
  %s1 = inlined_call_operand.vmem [shape: bf16[16,96], index: 1, kind: input, shape index: {}]
  %s2 = inlined_call_operand.vmem [shape: bf16[32,96], index: 2, kind: input, shape index: {}]
  %s3 = inlined_call_operand.vmem [shape: f32[1,96], index: 3, kind: input, shape index: {}]
  %s4 = inlined_call_operand.vmem [shape: f32[1,32], index: 4, kind: input, shape index: {}]
  %s5 = inlined_call_operand.vmem [shape: f32[8,32], index: 5, kind: input, shape index: {}]
  %s6 = inlined_call_operand.hbm [shape: f32[20,8,32], index: 6, kind: output, shape index: {0}]
  %s7 = inlined_call_operand.hbm [shape: f32[8,32], index: 7, kind: output, shape index: {1}]
  %8 = xla_tuple %s6, %s7
  %s9 = sld [smem:[#allocation0]]
  $region69: #{tpu_custom_call.1} parent=0
    _
  %s11 = ssub.s32 1, %s9
  %s12 = scalar_select 0, %s11, %s9
  $region1: #{tpu_custom_call.1} parent=0
    #allocation3 [shape = 'u8[32768]{0}', space=vmem, size = 0x8000, scoped, tag = 'output window, operand 0']
    #allocation4 [shape = 's32[2]{0}', space=sflag, size = 0x8, scoped, tag = 'scoped memory for tpu_custom_call.1']
    #allocation5 [shape = 'u8[4096]{0}', space=vmem, size = 0x1000, scoped, tag = 'output window, operand 1, single buffered']
    #allocation6 [shape = 's32[1]{0}', space=sflag, size = 0x4, scoped, tag = 'scoped memory for tpu_custom_call.1']
    %13 = vsyncpa [#allocation4], 0
    %s14 = scalar_lea.sflag [#allocation4], 1
    %15 = vsyncpa %s14, 0
    %16 = vsyncpa [#allocation6], 0
    loop: start=0, step=1, limit=7
    $region2: #{tpu_custom_call.1} parent=1 // loop_pre_header
      _
    $region3: #{tpu_custom_call.1} parent=1 // loop_header
      %s18 = sphi 0, %s22
      %p19 = scmp.ge.s32.totalorder %s18, 7
      %s25 = sphi 0, %s37
      %s26 = sphi 0, %s33
      %s27 = sphi 0, %s25
      %s28 = sphi 0, %s26
      %s29 = sphi 0, %s27
      %s30 = sphi 0, %s28
      %s42 = sphi 0, %s44
      %s45 = sphi 0, %s42
      %s46 = sphi 0, %s45
      %s62 = sphi 0, %s46
      %s66 = sphi 0, %s66
      %s68 = sphi 0, %s66
      %s69 = sphi 0, %s68
      %s83 = sphi 0, %s69
      %s87 = sphi 0, %s87
      %s89 = sphi 0, %s87
      %s90 = sphi 0, %s89
      %s104 = sphi 0, %s90
      %s108 = sphi 0, %s108
      %s110 = sphi 0, %s108
      %s111 = sphi 0, %s110
      %s125 = sphi 0, %s111
      %s129 = sphi 0, %s129
      %s131 = sphi 0, %s129
      %s132 = sphi 0, %s131
      %s146 = sphi 0, %s132
      %s152 = sphi 0, %s154
      %s155 = sphi 0, %s152
      %s156 = sphi 0, %s155
      %s172 = sphi 0, %s156
      %s180 = sphi 0, %s182
      %s183 = sphi 0, %s180
      %s184 = sphi 0, %s183
      %s200 = sphi 0, %s184
      %s206 = sphi 0, %s208
      %s209 = sphi 0, %s206
      %s210 = sphi 0, %s209
      %s226 = sphi 0, %s210
    $region4: #{tpu_custom_call.1} parent=1 // loop_header_branch
      %21 = sbr.rel (%p19) target = $region8
    $region5: #{tpu_custom_call.1} parent=1 // loop_body
      %s23 = ssub.s32 %s18, 1
      %s24 = ssub.s32 %s18, 2
      %s31 = sadd.s32 1, %s26
      %p32 = scmp.ge.s32.totalorder %s31, 5
      %s33 = scalar_select %p32, 0, %s31
      %s34 = sadd.s32 1, %s25
      %s35 = scalar_select %p32, %s34, %s25
      %p36 = scmp.ge.s32.totalorder %s35, 1
      %s37 = scalar_select %p36, 0, %s35
      %s38 = ssub.s32 %s26, %s33
      %s39 = ssub.s32 %s25, %s37
      %s40 = sor.u32 %s38, %s39
      %p41 = scmp.eq.s32.totalorder %s40, 0
      %s43 = sadd.s32 %s42, 1
      %s44 = scalar_select %p41, %s42, %s43
      %p47 = pneg %p41
      %p48 = scmp.eq.s32.totalorder %s18, 4
      %p49 = por %p47, %p48
      %p50 = scmp.ne.s32.totalorder %s42, %s45
      %p51 = scmp.eq.s32.totalorder %s18, 0
      %p52 = por %p50, %p51
      %p53 = scmp.ne.s32.totalorder %s42, %s45
      %p54 = scmp.eq.s32.totalorder %s23, 4
      %p55 = por %p53, %p54
      %p56 = scmp.ne.s32.totalorder %s45, %s46
      %p57 = scmp.eq.s32.totalorder %s23, 0
      %p58 = por %p56, %p57
      %p59 = scmp.ne.s32.totalorder %s45, %s46
      %p60 = scmp.eq.s32.totalorder %s24, 4
      %p61 = por %p59, %p60
      %p63 = scmp.ne.s32.totalorder %s46, %s62
      %p64 = scmp.eq.s32.totalorder %s24, 0
      %p65 = por %p63, %p64
      %s67 = sadd.s32 %s66, 1
      %p70 = scmp.eq.s32.totalorder %s18, 4
      %p71 = scmp.ne.s32.totalorder %s66, %s68
      %p72 = scmp.eq.s32.totalorder %s18, 0
      %p73 = por %p71, %p72
      %p74 = scmp.ne.s32.totalorder %s66, %s68
      %p75 = scmp.eq.s32.totalorder %s23, 4
      %p76 = por %p74, %p75
      %p77 = scmp.ne.s32.totalorder %s68, %s69
      %p78 = scmp.eq.s32.totalorder %s23, 0
      %p79 = por %p77, %p78
      %p80 = scmp.ne.s32.totalorder %s68, %s69
      %p81 = scmp.eq.s32.totalorder %s24, 4
      %p82 = por %p80, %p81
      %p84 = scmp.ne.s32.totalorder %s69, %s83
      %p85 = scmp.eq.s32.totalorder %s24, 0
      %p86 = por %p84, %p85
      %s88 = sadd.s32 %s87, 1
      %p91 = scmp.eq.s32.totalorder %s18, 4
      %p92 = scmp.ne.s32.totalorder %s87, %s89
      %p93 = scmp.eq.s32.totalorder %s18, 0
      %p94 = por %p92, %p93
      %p95 = scmp.ne.s32.totalorder %s87, %s89
      %p96 = scmp.eq.s32.totalorder %s23, 4
      %p97 = por %p95, %p96
      %p98 = scmp.ne.s32.totalorder %s89, %s90
      %p99 = scmp.eq.s32.totalorder %s23, 0
      %p100 = por %p98, %p99
      %p101 = scmp.ne.s32.totalorder %s89, %s90
      %p102 = scmp.eq.s32.totalorder %s24, 4
      %p103 = por %p101, %p102
      %p105 = scmp.ne.s32.totalorder %s90, %s104
      %p106 = scmp.eq.s32.totalorder %s24, 0
      %p107 = por %p105, %p106
      %s109 = sadd.s32 %s108, 1
      %p112 = scmp.eq.s32.totalorder %s18, 4
      %p113 = scmp.ne.s32.totalorder %s108, %s110
      %p114 = scmp.eq.s32.totalorder %s18, 0
      %p115 = por %p113, %p114
      %p116 = scmp.ne.s32.totalorder %s108, %s110
      %p117 = scmp.eq.s32.totalorder %s23, 4
      %p118 = por %p116, %p117
      %p119 = scmp.ne.s32.totalorder %s110, %s111
      %p120 = scmp.eq.s32.totalorder %s23, 0
      %p121 = por %p119, %p120
      %p122 = scmp.ne.s32.totalorder %s110, %s111
      %p123 = scmp.eq.s32.totalorder %s24, 4
      %p124 = por %p122, %p123
      %p126 = scmp.ne.s32.totalorder %s111, %s125
      %p127 = scmp.eq.s32.totalorder %s24, 0
      %p128 = por %p126, %p127
      %s130 = sadd.s32 %s129, 1
      %p133 = scmp.eq.s32.totalorder %s18, 4
      %p134 = scmp.ne.s32.totalorder %s129, %s131
      %p135 = scmp.eq.s32.totalorder %s18, 0
      %p136 = por %p134, %p135
      %p137 = scmp.ne.s32.totalorder %s129, %s131
      %p138 = scmp.eq.s32.totalorder %s23, 4
      %p139 = por %p137, %p138
      %p140 = scmp.ne.s32.totalorder %s131, %s132
      %p141 = scmp.eq.s32.totalorder %s23, 0
      %p142 = por %p140, %p141
      %p143 = scmp.ne.s32.totalorder %s131, %s132
      %p144 = scmp.eq.s32.totalorder %s24, 4
      %p145 = por %p143, %p144
      %p147 = scmp.ne.s32.totalorder %s132, %s146
      %p148 = scmp.eq.s32.totalorder %s24, 0
      %p149 = por %p147, %p148
      %s150 = ssub.s32 %s25, %s37
      %p151 = scmp.eq.s32.totalorder %s150, 0
      %s153 = sadd.s32 %s152, 1
      %s154 = scalar_select %p151, %s152, %s153
      %p157 = pneg %p151
      %p158 = scmp.eq.s32.totalorder %s18, 4
      %p159 = por %p157, %p158
      %p160 = scmp.ne.s32.totalorder %s152, %s155
      %p161 = scmp.eq.s32.totalorder %s18, 0
      %p162 = por %p160, %p161
      %p163 = scmp.ne.s32.totalorder %s152, %s155
      %p164 = scmp.eq.s32.totalorder %s23, 4
      %p165 = por %p163, %p164
      %p166 = scmp.ne.s32.totalorder %s155, %s156
      %p167 = scmp.eq.s32.totalorder %s23, 0
      %p168 = por %p166, %p167
      %p169 = scmp.ne.s32.totalorder %s155, %s156
      %p170 = scmp.eq.s32.totalorder %s24, 4
      %p171 = por %p169, %p170
      %p173 = scmp.ne.s32.totalorder %s156, %s172
      %p174 = scmp.eq.s32.totalorder %s24, 0
      %p175 = por %p173, %p174
      %s176 = ssub.s32 %s26, %s33
      %s177 = ssub.s32 %s25, %s37
      %s178 = sor.u32 %s176, %s177
      %p179 = scmp.eq.s32.totalorder %s178, 0
      %s181 = sadd.s32 %s180, 1
      %s182 = scalar_select %p179, %s180, %s181
      %p185 = pneg %p179
      %p186 = scmp.eq.s32.totalorder %s18, 4
      %p187 = por %p185, %p186
      %p188 = scmp.ne.s32.totalorder %s180, %s183
      %p189 = scmp.eq.s32.totalorder %s18, 0
      %p190 = por %p188, %p189
      %p191 = scmp.ne.s32.totalorder %s180, %s183
      %p192 = scmp.eq.s32.totalorder %s23, 4
      %p193 = por %p191, %p192
      %p194 = scmp.ne.s32.totalorder %s183, %s184
      %p195 = scmp.eq.s32.totalorder %s23, 0
      %p196 = por %p194, %p195
      %p197 = scmp.ne.s32.totalorder %s183, %s184
      %p198 = scmp.eq.s32.totalorder %s24, 4
      %p199 = por %p197, %p198
      %p201 = scmp.ne.s32.totalorder %s184, %s200
      %p202 = scmp.eq.s32.totalorder %s24, 0
      %p203 = por %p201, %p202
      %s204 = ssub.s32 %s25, %s37
      %p205 = scmp.eq.s32.totalorder %s204, 0
      %s207 = sadd.s32 %s206, 1
      %s208 = scalar_select %p205, %s206, %s207
      %p211 = pneg %p205
      %p212 = scmp.eq.s32.totalorder %s18, 4
      %p213 = por %p211, %p212
      %p214 = scmp.ne.s32.totalorder %s206, %s209
      %p215 = scmp.eq.s32.totalorder %s18, 0
      %p216 = por %p214, %p215
      %p217 = scmp.ne.s32.totalorder %s206, %s209
      %p218 = scmp.eq.s32.totalorder %s23, 4
      %p219 = por %p217, %p218
      %p220 = scmp.ne.s32.totalorder %s209, %s210
      %p221 = scmp.eq.s32.totalorder %s23, 0
      %p222 = por %p220, %p221
      %p223 = scmp.ne.s32.totalorder %s209, %s210
      %p224 = scmp.eq.s32.totalorder %s24, 4
      %p225 = por %p223, %p224
      %p227 = scmp.ne.s32.totalorder %s210, %s226
      %p228 = scmp.eq.s32.totalorder %s24, 0
      %p229 = por %p227, %p228
      %p230 = scmp.le.s32.totalorder 1, %s18
      %p231 = scmp.lt.s32.totalorder %s18, 6
      %p232 = pnand %p230, %p231
      %p233 = pneg %p232
      // Predicated region
      $region9: #{tpu_custom_call.1} parent=5 // pred_check
        _
      $region10: #{tpu_custom_call.1} parent=5 // pred_check_branch
        %235 = sbr.rel (%p232) target = $region12
      $region11: #{tpu_custom_call.1} parent=5 // pred_region
        %s236 = ssub.s32 %s18, 1
        // Predicated region
        $region13: #{tpu_custom_call.1} parent=11 // pred_check
          %p237 = pneg %p79
        $region14: #{tpu_custom_call.1} parent=11 // pred_check_branch
          %239 = sbr.rel (%p237) target = $region16
        $region15: #{tpu_custom_call.1} parent=11 // pred_region
          _
        $region16: #{tpu_custom_call.1} parent=11 // pred_fallthru
          _
        // Predicated region
        $region17: #{tpu_custom_call.1} parent=11 // pred_check
          %p240 = pneg %p100
        $region18: #{tpu_custom_call.1} parent=11 // pred_check_branch
          %242 = sbr.rel (%p240) target = $region20
        $region19: #{tpu_custom_call.1} parent=11 // pred_region
          _
        $region20: #{tpu_custom_call.1} parent=11 // pred_fallthru
          _
        // Predicated region
        $region21: #{tpu_custom_call.1} parent=11 // pred_check
          %p243 = pneg %p121
        $region22: #{tpu_custom_call.1} parent=11 // pred_check_branch
          %245 = sbr.rel (%p243) target = $region24
        $region23: #{tpu_custom_call.1} parent=11 // pred_region
          _
        $region24: #{tpu_custom_call.1} parent=11 // pred_fallthru
          _
        // Predicated region
        $region25: #{tpu_custom_call.1} parent=11 // pred_check
          %p246 = pneg %p142
        $region26: #{tpu_custom_call.1} parent=11 // pred_check_branch
          %248 = sbr.rel (%p246) target = $region28
        $region27: #{tpu_custom_call.1} parent=11 // pred_region
          _
        $region28: #{tpu_custom_call.1} parent=11 // pred_fallthru
          _
        // Predicated region
        $region29: #{tpu_custom_call.1} parent=11 // pred_check
          %p249 = pneg %p168
        $region30: #{tpu_custom_call.1} parent=11 // pred_check_branch
          %251 = sbr.rel (%p249) target = $region32
        $region31: #{tpu_custom_call.1} parent=11 // pred_region
          %p252 = scmp.lt.s32.totalorder %s27, 0
          %s253 = scalar_select %p252, %s27, 0
          %s254 = smul.addr %s253, 8
          %s255 = scalar_lea.vmem %s5, %s254
        $region32: #{tpu_custom_call.1} parent=11 // pred_fallthru
          _
      $region12: #{tpu_custom_call.1} parent=5 // pred_fallthru
        _
      %p256 = scmp.lt.s32.totalorder %s18, 5
      // Predicated region
      $region33: #{tpu_custom_call.1} parent=5 // pred_check
        %p257 = pneg %p256
      $region34: #{tpu_custom_call.1} parent=5 // pred_check_branch
        %259 = sbr.rel (%p257) target = $region36
      $region35: #{tpu_custom_call.1} parent=5 // pred_region
        // Predicated region
        $region37: #{tpu_custom_call.1} parent=35 // pred_check
          %p260 = pneg %p52
        $region38: #{tpu_custom_call.1} parent=35 // pred_check_branch
          %262 = sbr.rel (%p260) target = $region40
        $region39: #{tpu_custom_call.1} parent=35 // pred_region
          %s263 = smul.u32 4, %s26
          %p264 = scmp.lt.s32.totalorder %s263, 19
          %s265 = scalar_select %p264, %s263, 19
          %p266 = scmp.lt.s32.totalorder %s25, 0
          %s267 = scalar_select %p266, %s25, 0
          %s268 = sadd.s32 %s267, %s265
          %s269 = smul.addr %s268, 8
          %s270 = scalar_lea.vmem %s0, %s269
          %s271 = smul.u32 4, %s26
        $region40: #{tpu_custom_call.1} parent=35 // pred_fallthru
          _
      $region36: #{tpu_custom_call.1} parent=5 // pred_fallthru
        _
      %p272 = scmp.le.s32.totalorder 1, %s18
      %p273 = scmp.lt.s32.totalorder %s18, 6
      %p274 = pnand %p272, %p273
      %p275 = pneg %p274
      // Predicated region
      $region41: #{tpu_custom_call.1} parent=5 // pred_check
        _
      $region42: #{tpu_custom_call.1} parent=5 // pred_check_branch
        %277 = sbr.rel (%p274) target = $region44
      $region43: #{tpu_custom_call.1} parent=5 // pred_region
        %s278 = ssub.s32 %s18, 1
        %s279 = smul.u32 4, %s28
        %p280 = scmp.lt.s32.totalorder %s279, 19
        %s281 = scalar_select %p280, %s279, 19
        %p282 = scmp.lt.s32.totalorder %s27, 0
        %s283 = scalar_select %p282, %s27, 0
        %s284 = sadd.s32 %s283, %s281
        %s285 = smul.addr %s284, 8
        %s286 = scalar_lea.vmem %s0, %s285
        %p287 = pneg %p58
        %p288 = pneg %p55
        %p289 = pneg %p79
        %p290 = pneg %p76
        %p291 = pneg %p100
        %p292 = pneg %p97
        %p293 = pneg %p121
        %p294 = pneg %p118
        %p295 = pneg %p142
        %p296 = pneg %p139
        %p297 = scmp.lt.s32.totalorder %s27, 0
        %s298 = scalar_select %p297, %s27, 0
        %s299 = smul.addr %s298, 8
        %s300 = scalar_lea.vmem %s5, %s299
        %p301 = pneg %p168
        %p302 = pneg %p165
        %p303 = pneg %p196
        %p304 = pneg %p193
        %s305 = sand.u32 %s183, 1
        %s306 = scalar_lea.sflag [#allocation4], %s305
        %s307 = sand.u32 %s183, 1
        %s308 = smul.addr %s307, 32
        %s309 = scalar_lea.vmem [#allocation3], %s308
        %p310 = pneg %p222
        %p311 = pneg %p219
        %s312 = smul.u32 4, %s28
        %p313 = scmp.lt.s32.totalorder %s312, 19
        %s314 = scalar_select %p313, %s312, 19
        %p315 = scmp.lt.s32.totalorder %s27, 0
        %s316 = scalar_select %p315, %s27, 0
        %s317 = sadd.s32 %s316, %s314
        %s318 = smul.addr %s317, 8
        %s319 = scalar_lea.vmem %s0, %s318
        %s320 = smul.u32 4, %s28
        %p321 = scmp.lt.s32.totalorder %s27, 0
        %s322 = scalar_select %p321, %s27, 0
        %s323 = smul.addr %s322, 8
        %s324 = scalar_lea.vmem %s5, %s323
        %s325 = smul.u32 4, %s28
        %p327 = scmp.eq.s32.totalorder %s28, 0
        // Predicated region
        $region45: #{tpu_custom_call.1} parent=43 // pred_check
          %p328 = pneg %p327
        $region46: #{tpu_custom_call.1} parent=43 // pred_check_branch
          %330 = sbr.rel (%p328) target = $region48
        $region47: #{tpu_custom_call.1} parent=43 // pred_region
          %v331 = vld [vmem:[%s324] sm:$0xff]
          %vm332 = vcmask 261120
          %333 = vst.msk [vmem:[#allocation5] sm:$0xff] %vm332, %v331
        $region48: #{tpu_custom_call.1} parent=43 // pred_fallthru
          _
        %v334 = vld [vmem:[%s1] sm:$0xf]
        %v335 = vld [vmem:[%s1 + $0x4] sm:$0xf]
        %v336 = vld [vmem:[%s2] sm:$0xf]
        %v337 = vld [vmem:[%s2 + $0x4] sm:$0xf]
        %v338 = vld [vmem:[%s2 + $0x8] sm:$0xf]
        %v339 = vld [vmem:[%s2 + $0xc] sm:$0xf]
        %v340 = vld [vmem:[%s4] sm:$0x1]
        %v342 = vlaneseq
        %v343 = vshrl.u32 %v342, 7
        %v344 = vsub.s32 0, %v343
        %v345 = vrot.slane %v340, %v344
        %v346 = vld [vmem:[%s319] sm:$0xff]
        %v347 = vld [vmem:[%s319 + $0x8] sm:$0xff]
        %v348 = vld [vmem:[%s319 + $0x10] sm:$0xff]
        %v349 = vld [vmem:[%s319 + $0x18] sm:$0xff]
        %v350 = vpack.c.bf16 %v346, %v346
        %v351 = vpack.c.bf16 %v347, %v347
        %v352 = vpack.c.bf16 %v348, %v348
        %v353 = vpack.c.bf16 %v349, %v349
        %v354 = vld [vmem:[%s3] sm:$0x1]
        %v356 = vlaneseq
        %v357 = vshrl.u32 %v356, 7
        %v358 = vsub.s32 0, %v357
        %v359 = vrot.slane %v354, %v358
        %v365 = vunpack.c.l.b16 %v350
        %v366 = vunpack.c.l.b16 %v351
        %v367 = vunpack.c.l.b16 %v352
        %v368 = vunpack.c.l.b16 %v353
        %v369 = vpack.c.b16 %v366, %v365
        %v370 = vpack.c.b16 %v368, %v367
        %v373 = vunpack.c.l.b16 %v334
        %v374 = vunpack.c.l.b16 %v335
        %v375 = vpack.c.b16 %v374, %v373
        %vm377 = vcmask 130048
        %v379 = vsel %vm377, %v369, 0
        %v382 = vsel %vm377, %v370, 0
        %384 = vmatprep.subr.bf16.mxu0 0
        %385 = vmatpush1.bf16.msra.mxu0 0
        %386 = vmatprep.subr.bf16.mxu0 0
        %387 = vmatpush1.bf16.msra.mxu0 0
        %388 = vmatprep.subr.bf16.mxu0 0
        %389 = vmatpush1.bf16.msra.mxu0 0
        %390 = vmatprep.subr.bf16.mxu0 0
        %391 = vmatpush1.bf16.msra.mxu0 0
        %392 = vmatprep.subr.bf16.mxu0 0
        %393 = vmatpush1.bf16.msra.mxu0 0
        %394 = vmatprep.subr.bf16.mxu0 0
        %395 = vmatpush1.bf16.msra.mxu0 0
        %396 = vmatprep.subr.bf16.mxu0 0
        %397 = vmatpush1.bf16.msra.mxu0 0
        %398 = vmatprep.subr.bf16.mxu0 0
        %399 = vmatpush1.bf16.msra.mxu0 %v375
        %400 = vmatprep.subr.bf16.mxu0 0
        %401 = vmatpush2.bf16.msra.mxu0 0
        %402 = vmatprep.subr.bf16.mxu0 0
        %403 = vmatpush2.bf16.msra.mxu0 0
        %404 = vmatprep.subr.bf16.mxu0 0
        %405 = vmatpush2.bf16.msra.mxu0 0
        %406 = vmatprep.subr.bf16.mxu0 0
        %407 = vmatpush2.bf16.msra.mxu0 0
        %408 = vmatprep.subr.bf16.mxu0 0
        %409 = vmatpush2.bf16.msra.mxu0 0
        %410 = vmatprep.subr.bf16.mxu0 0
        %411 = vmatpush2.bf16.msra.mxu0 0
        %412 = vmatprep.subr.bf16.mxu0 0
        %413 = vmatpush2.bf16.msra.mxu0 0
        %414 = vmatprep.subr.bf16.mxu0 0
        %415 = vmatpush2.bf16.msra.mxu0 0
        %416 = vmatprep.mubr.bf16.mxu0 0
        %417 = vmatmul.mubr.bf16.gmra.mxu0 %v379
        %v418 = vpop.f32.mrf.mxu0
        %v419 = vadd.f32 %v359, %v418
        %v420 = vpop.f32.mrf.mxu0
        %v421 = vpop.f32.mrf.mxu0
        %v422 = vadd.f32 %v359, %v421
        %v423 = vpop.f32.mrf.mxu0
        %424 = vmatprep.mubr.bf16.mxu0 0
        %425 = vmatmul.mubr.bf16.gmra.mxu0 %v382
        %v426 = vpop.f32.mrf.mxu0
        %v427 = vadd.f32 %v359, %v426
        %v428 = vpop.f32.mrf.mxu0
        %v429 = vpop.f32.mrf.mxu0
        %v430 = vadd.f32 %v359, %v429
        %v431 = vpop.f32.mrf.mxu0
        %432 = vdwg.mxu0
        %vm433 = vcmask 785408
        %434 = vst.msk [vmem:[#allocation2] sm:$0xff] %vm433, %v419
        %435 = vst.msk [vmem:[#allocation2 + $0x8] sm:$0xff] %vm433, %v422
        %436 = vst.msk [vmem:[#allocation2 + $0x10] sm:$0xff] %vm433, %v427
        %437 = vst.msk [vmem:[#allocation2 + $0x18] sm:$0xff] %vm433, %v430
        %v438 = vld [vmem:[#allocation5] sm:$0xff]
        %v439 = vld [vmem:[#allocation2] sm:$0xff]
        %v440 = vpack.c.bf16 %v438, %v438
        %v445 = vunpack.c.l.b16 %v336
        %v446 = vunpack.c.l.b16 %v337
        %v447 = vunpack.c.l.b16 %v338
        %v448 = vunpack.c.l.b16 %v339
        %v449 = vpack.c.b16 %v446, %v445
        %v450 = vpack.c.b16 %v448, %v447
        %vm453 = vcmask 261120
        %v455 = vsel %vm453, %v440, 0
        %457 = vmatprep.subr.bf16.mxu0 0
        %458 = vmatpush1.bf16.msra.mxu0 0
        %459 = vmatprep.subr.bf16.mxu0 0
        %460 = vmatpush1.bf16.msra.mxu0 0
        %461 = vmatprep.subr.bf16.mxu0 0
        %462 = vmatpush1.bf16.msra.mxu0 0
        %463 = vmatprep.subr.bf16.mxu0 0
        %464 = vmatpush1.bf16.msra.mxu0 0
        %465 = vmatprep.subr.bf16.mxu0 0
        %466 = vmatpush1.bf16.msra.mxu0 0
        %467 = vmatprep.subr.bf16.mxu0 0
        %468 = vmatpush1.bf16.msra.mxu0 0
        %469 = vmatprep.subr.bf16.mxu0 0
        %470 = vmatpush1.bf16.msra.mxu0 %v450
        %471 = vmatprep.subr.bf16.mxu0 0
        %472 = vmatpush1.bf16.msra.mxu0 %v449
        %473 = vmatprep.subr.bf16.mxu0 0
        %474 = vmatpush2.bf16.msra.mxu0 0
        %475 = vmatprep.subr.bf16.mxu0 0
        %476 = vmatpush2.bf16.msra.mxu0 0
        %477 = vmatprep.subr.bf16.mxu0 0
        %478 = vmatpush2.bf16.msra.mxu0 0
        %479 = vmatprep.subr.bf16.mxu0 0
        %480 = vmatpush2.bf16.msra.mxu0 0
        %481 = vmatprep.subr.bf16.mxu0 0
        %482 = vmatpush2.bf16.msra.mxu0 0
        %483 = vmatprep.subr.bf16.mxu0 0
        %484 = vmatpush2.bf16.msra.mxu0 0
        %485 = vmatprep.subr.bf16.mxu0 0
        %486 = vmatpush2.bf16.msra.mxu0 0
        %487 = vmatprep.subr.bf16.mxu0 0
        %488 = vmatpush2.bf16.msra.mxu0 0
        %489 = vmatprep.mubr.bf16.mxu0 0
        %490 = vmatmul.mubr.bf16.gmra.mxu0 %v455
        %v491 = vpop.f32.mrf.mxu0
        %v492 = vadd.f32 0.0, %v491
        %v493 = vpop.f32.mrf.mxu0
        %v494 = vpop.f32.mrf.mxu0
        %v495 = vpop.f32.mrf.mxu0
        %496 = vdwg.mxu0
        %v497 = vadd.f32 %v439, %v492
        %v498 = vxor.u32 %v497, 2147483648
        %v499 = vmul.f32 %v498, 1.442695
        %v500 = vpow.pop %v499
        %v501 = vadd.f32 %v500, 1.0
        %v502 = vrcp.pop %v501
        %v503 = vmul.f32 1.0, %v502
        %504 = vrot.lane.b32.xlu0 %v345, 64
        %v505 = vpop.permute.xlu0 %504
        %v507 = vadd.f32 %v492, %v505
        %509 = vrot.lane.b32.xlu0 %v507, 64
        %v510 = vpop.permute.xlu0 %509
        %v512 = vmul.f32 %v503, %v510
        %514 = vrot.lane.b32.xlu0 %v512, 64
        %v515 = vpop.permute.xlu0 %514
        %v517 = vadd.f32 %v439, %v515
        %v518 = vtanh.pop %v517
        %v519 = vsub.f32 1.0, %v503
        %521 = vrot.lane.b32.xlu0 %v518, 96
        %v522 = vpop.permute.xlu0 %521
        %v524 = vmul.f32 %v519, %v522
        %526 = vrot.lane.b32.xlu0 %v438, 32
        %v527 = vpop.permute.xlu0 %526
        %v529 = vmul.f32 %v503, %v527
        %v530 = vadd.f32 %v524, %v529
        %s531 = smul.u32 %s28, 4
        %p532 = scmp.lt.s32.totalorder %s531, 18
        %s533 = scalar_select %p532, 1, 0
        %v534 = vstv %s533
        %vm535 = vcmp.eq.s32.totalorder %v534, 1
        %v536 = vsel %vm535, %v530, %v527
        %538 = vrot.lane.b32.xlu0 %v536, 96
        %v539 = vpop.permute.xlu0 %538
        %541 = vst.msk [vmem:[%s309] sm:$0xff] %vm453, %v539
        %s542 = scalar_lea.vmem [#allocation2], 8
        %v543 = vld [vmem:[%s542] sm:$0xff]
        %v544 = vpack.c.bf16 %v536, %v536
        %546 = vrot.lane.b32.xlu0 %v544, 96
        %v547 = vpop.permute.xlu0 %546
        %v549 = vsel %vm453, %v547, 0
        %551 = vmatprep.subr.bf16.mxu0 0
        %552 = vmatpush1.bf16.msra.mxu0 0
        %553 = vmatprep.subr.bf16.mxu0 0
        %554 = vmatpush1.bf16.msra.mxu0 0
        %555 = vmatprep.subr.bf16.mxu0 0
        %556 = vmatpush1.bf16.msra.mxu0 0
        %557 = vmatprep.subr.bf16.mxu0 0
        %558 = vmatpush1.bf16.msra.mxu0 0
        %559 = vmatprep.subr.bf16.mxu0 0
        %560 = vmatpush1.bf16.msra.mxu0 0
        %561 = vmatprep.subr.bf16.mxu0 0
        %562 = vmatpush1.bf16.msra.mxu0 0
        %563 = vmatprep.subr.bf16.mxu0 0
        %564 = vmatpush1.bf16.msra.mxu0 %v450
        %565 = vmatprep.subr.bf16.mxu0 0
        %566 = vmatpush1.bf16.msra.mxu0 %v449
        %567 = vmatprep.subr.bf16.mxu0 0
        %568 = vmatpush2.bf16.msra.mxu0 0
        %569 = vmatprep.subr.bf16.mxu0 0
        %570 = vmatpush2.bf16.msra.mxu0 0
        %571 = vmatprep.subr.bf16.mxu0 0
        %572 = vmatpush2.bf16.msra.mxu0 0
        %573 = vmatprep.subr.bf16.mxu0 0
        %574 = vmatpush2.bf16.msra.mxu0 0
        %575 = vmatprep.subr.bf16.mxu0 0
        %576 = vmatpush2.bf16.msra.mxu0 0
        %577 = vmatprep.subr.bf16.mxu0 0
        %578 = vmatpush2.bf16.msra.mxu0 0
        %579 = vmatprep.subr.bf16.mxu0 0
        %580 = vmatpush2.bf16.msra.mxu0 0
        %581 = vmatprep.subr.bf16.mxu0 0
        %582 = vmatpush2.bf16.msra.mxu0 0
        %583 = vmatprep.mubr.bf16.mxu0 0
        %584 = vmatmul.mubr.bf16.gmra.mxu0 %v549
        %v585 = vpop.f32.mrf.mxu0
        %v586 = vadd.f32 0.0, %v585
        %v587 = vpop.f32.mrf.mxu0
        %v588 = vpop.f32.mrf.mxu0
        %v589 = vpop.f32.mrf.mxu0
        %590 = vdwg.mxu0
        %v591 = vadd.f32 %v543, %v586
        %v592 = vxor.u32 %v591, 2147483648
        %v593 = vmul.f32 %v592, 1.442695
        %v594 = vpow.pop %v593
        %v595 = vadd.f32 %v594, 1.0
        %v596 = vrcp.pop %v595
        %v597 = vmul.f32 1.0, %v596
        %v598 = vadd.f32 %v586, %v505
        %600 = vrot.lane.b32.xlu0 %v598, 64
        %v601 = vpop.permute.xlu0 %600
        %v603 = vmul.f32 %v597, %v601
        %605 = vrot.lane.b32.xlu0 %v603, 64
        %v606 = vpop.permute.xlu0 %605
        %v608 = vadd.f32 %v543, %v606
        %v609 = vtanh.pop %v608
        %v610 = vsub.f32 1.0, %v597
        %612 = vrot.lane.b32.xlu0 %v609, 96
        %v613 = vpop.permute.xlu0 %612
        %v615 = vmul.f32 %v610, %v613
        %v616 = vmul.f32 %v597, %v536
        %v617 = vadd.f32 %v615, %v616
        %s618 = sadd.s32 %s531, 1
        %p619 = scmp.lt.s32.totalorder %s618, 18
        %s620 = scalar_select %p619, 1, 0
        %v621 = vstv %s620
        %vm622 = vcmp.eq.s32.totalorder %v621, 1
        %v623 = vsel %vm622, %v617, %v536
        %625 = vrot.lane.b32.xlu0 %v623, 96
        %v626 = vpop.permute.xlu0 %625
        %s628 = scalar_lea.vmem %s309, 8 [#allocation3]
        %629 = vst.msk [vmem:[%s628] sm:$0xff] %vm453, %v626
        %s630 = scalar_lea.vmem [#allocation2], 16
        %v631 = vld [vmem:[%s630] sm:$0xff]
        %v632 = vpack.c.bf16 %v623, %v623
        %634 = vrot.lane.b32.xlu0 %v632, 96
        %v635 = vpop.permute.xlu0 %634
        %v637 = vsel %vm453, %v635, 0
        %639 = vmatprep.subr.bf16.mxu0 0
        %640 = vmatpush1.bf16.msra.mxu0 0
        %641 = vmatprep.subr.bf16.mxu0 0
        %642 = vmatpush1.bf16.msra.mxu0 0
        %643 = vmatprep.subr.bf16.mxu0 0
        %644 = vmatpush1.bf16.msra.mxu0 0
        %645 = vmatprep.subr.bf16.mxu0 0
        %646 = vmatpush1.bf16.msra.mxu0 0
        %647 = vmatprep.subr.bf16.mxu0 0
        %648 = vmatpush1.bf16.msra.mxu0 0
        %649 = vmatprep.subr.bf16.mxu0 0
        %650 = vmatpush1.bf16.msra.mxu0 0
        %651 = vmatprep.subr.bf16.mxu0 0
        %652 = vmatpush1.bf16.msra.mxu0 %v450
        %653 = vmatprep.subr.bf16.mxu0 0
        %654 = vmatpush1.bf16.msra.mxu0 %v449
        %655 = vmatprep.subr.bf16.mxu0 0
        %656 = vmatpush2.bf16.msra.mxu0 0
        %657 = vmatprep.subr.bf16.mxu0 0
        %658 = vmatpush2.bf16.msra.mxu0 0
        %659 = vmatprep.subr.bf16.mxu0 0
        %660 = vmatpush2.bf16.msra.mxu0 0
        %661 = vmatprep.subr.bf16.mxu0 0
        %662 = vmatpush2.bf16.msra.mxu0 0
        %663 = vmatprep.subr.bf16.mxu0 0
        %664 = vmatpush2.bf16.msra.mxu0 0
        %665 = vmatprep.subr.bf16.mxu0 0
        %666 = vmatpush2.bf16.msra.mxu0 0
        %667 = vmatprep.subr.bf16.mxu0 0
        %668 = vmatpush2.bf16.msra.mxu0 0
        %669 = vmatprep.subr.bf16.mxu0 0
        %670 = vmatpush2.bf16.msra.mxu0 0
        %671 = vmatprep.mubr.bf16.mxu0 0
        %672 = vmatmul.mubr.bf16.gmra.mxu0 %v637
        %v673 = vpop.f32.mrf.mxu0
        %v674 = vadd.f32 0.0, %v673
        %v675 = vpop.f32.mrf.mxu0
        %v676 = vpop.f32.mrf.mxu0
        %v677 = vpop.f32.mrf.mxu0
        %678 = vdwg.mxu0
        %v679 = vadd.f32 %v631, %v674
        %v680 = vxor.u32 %v679, 2147483648
        %v681 = vmul.f32 %v680, 1.442695
        %v682 = vpow.pop %v681
        %v683 = vadd.f32 %v682, 1.0
        %v684 = vrcp.pop %v683
        %v685 = vmul.f32 1.0, %v684
        %v686 = vadd.f32 %v674, %v505
        %688 = vrot.lane.b32.xlu0 %v686, 64
        %v689 = vpop.permute.xlu0 %688
        %v691 = vmul.f32 %v685, %v689
        %693 = vrot.lane.b32.xlu0 %v691, 64
        %v694 = vpop.permute.xlu0 %693
        %v696 = vadd.f32 %v631, %v694
        %v697 = vtanh.pop %v696
        %v698 = vsub.f32 1.0, %v685
        %700 = vrot.lane.b32.xlu0 %v697, 96
        %v701 = vpop.permute.xlu0 %700
        %v703 = vmul.f32 %v698, %v701
        %v704 = vmul.f32 %v685, %v623
        %v705 = vadd.f32 %v703, %v704
        %s706 = sadd.s32 %s531, 2
        %p707 = scmp.lt.s32.totalorder %s706, 18
        %s708 = scalar_select %p707, 1, 0
        %v709 = vstv %s708
        %vm710 = vcmp.eq.s32.totalorder %v709, 1
        %v711 = vsel %vm710, %v705, %v623
        %713 = vrot.lane.b32.xlu0 %v711, 96
        %v714 = vpop.permute.xlu0 %713
        %s716 = scalar_lea.vmem %s309, 16 [#allocation3]
        %717 = vst.msk [vmem:[%s716] sm:$0xff] %vm453, %v714
        %s718 = scalar_lea.vmem [#allocation2], 24
        %v719 = vld [vmem:[%s718] sm:$0xff]
        %v720 = vpack.c.bf16 %v711, %v711
        %722 = vrot.lane.b32.xlu0 %v720, 96
        %v723 = vpop.permute.xlu0 %722
        %v725 = vsel %vm453, %v723, 0
        %727 = vmatprep.subr.bf16.mxu0 0
        %728 = vmatpush1.bf16.msra.mxu0 0
        %729 = vmatprep.subr.bf16.mxu0 0
        %730 = vmatpush1.bf16.msra.mxu0 0
        %731 = vmatprep.subr.bf16.mxu0 0
        %732 = vmatpush1.bf16.msra.mxu0 0
        %733 = vmatprep.subr.bf16.mxu0 0
        %734 = vmatpush1.bf16.msra.mxu0 0
        %735 = vmatprep.subr.bf16.mxu0 0
        %736 = vmatpush1.bf16.msra.mxu0 0
        %737 = vmatprep.subr.bf16.mxu0 0
        %738 = vmatpush1.bf16.msra.mxu0 0
        %739 = vmatprep.subr.bf16.mxu0 0
        %740 = vmatpush1.bf16.msra.mxu0 %v450
        %741 = vmatprep.subr.bf16.mxu0 0
        %742 = vmatpush1.bf16.msra.mxu0 %v449
        %743 = vmatprep.subr.bf16.mxu0 0
        %744 = vmatpush2.bf16.msra.mxu0 0
        %745 = vmatprep.subr.bf16.mxu0 0
        %746 = vmatpush2.bf16.msra.mxu0 0
        %747 = vmatprep.subr.bf16.mxu0 0
        %748 = vmatpush2.bf16.msra.mxu0 0
        %749 = vmatprep.subr.bf16.mxu0 0
        %750 = vmatpush2.bf16.msra.mxu0 0
        %751 = vmatprep.subr.bf16.mxu0 0
        %752 = vmatpush2.bf16.msra.mxu0 0
        %753 = vmatprep.subr.bf16.mxu0 0
        %754 = vmatpush2.bf16.msra.mxu0 0
        %755 = vmatprep.subr.bf16.mxu0 0
        %756 = vmatpush2.bf16.msra.mxu0 0
        %757 = vmatprep.subr.bf16.mxu0 0
        %758 = vmatpush2.bf16.msra.mxu0 0
        %759 = vmatprep.mubr.bf16.mxu0 0
        %760 = vmatmul.mubr.bf16.gmra.mxu0 %v725
        %v761 = vpop.f32.mrf.mxu0
        %v762 = vadd.f32 0.0, %v761
        %v763 = vpop.f32.mrf.mxu0
        %v764 = vpop.f32.mrf.mxu0
        %v765 = vpop.f32.mrf.mxu0
        %766 = vdwg.mxu0
        %v767 = vadd.f32 %v719, %v762
        %v768 = vxor.u32 %v767, 2147483648
        %v769 = vmul.f32 %v768, 1.442695
        %v770 = vpow.pop %v769
        %v771 = vadd.f32 %v770, 1.0
        %v772 = vrcp.pop %v771
        %v773 = vmul.f32 1.0, %v772
        %v774 = vadd.f32 %v762, %v505
        %776 = vrot.lane.b32.xlu0 %v774, 64
        %v777 = vpop.permute.xlu0 %776
        %v779 = vmul.f32 %v773, %v777
        %781 = vrot.lane.b32.xlu0 %v779, 64
        %v782 = vpop.permute.xlu0 %781
        %v784 = vadd.f32 %v719, %v782
        %v785 = vtanh.pop %v784
        %v786 = vsub.f32 1.0, %v773
        %788 = vrot.lane.b32.xlu0 %v785, 96
        %v789 = vpop.permute.xlu0 %788
        %v791 = vmul.f32 %v786, %v789
        %v792 = vmul.f32 %v773, %v711
        %v793 = vadd.f32 %v791, %v792
        %s794 = sadd.s32 %s531, 3
        %p795 = scmp.lt.s32.totalorder %s794, 18
        %s796 = scalar_select %p795, 1, 0
        %v797 = vstv %s796
        %vm798 = vcmp.eq.s32.totalorder %v797, 1
        %v799 = vsel %vm798, %v793, %v711
        %801 = vrot.lane.b32.xlu0 %v799, 96
        %v802 = vpop.permute.xlu0 %801
        %s804 = scalar_lea.vmem %s309, 24 [#allocation3]
        %805 = vst.msk [vmem:[%s804] sm:$0xff] %vm453, %v802
        %806 = vst.msk [vmem:[#allocation5] sm:$0xff] %vm453, %v802
        %s807 = sand.u32 %s183, 1
        %s808 = scalar_lea.sflag [#allocation4], %s807
        %s809 = sand.u32 %s183, 1
        %s810 = smul.addr %s809, 32
        %s811 = scalar_lea.vmem [#allocation3], %s810
        // Predicated region
        $region49: #{tpu_custom_call.1} parent=43 // pred_check
          %p812 = pneg %p193
        $region50: #{tpu_custom_call.1} parent=43 // pred_check_branch
          %814 = sbr.rel (%p812) target = $region52
        $region51: #{tpu_custom_call.1} parent=43 // pred_region
          %s815 = smul.u32 4, %s28
          %s817 = ssub.s32 512, 512
          %818 = vsyncadd %s808, %s817
          %s819 = sadd.s32 %s27, %s815
          %s820 = smul.addr %s819, 128
          %s821 = scalar_lea.hbm %s6, %s820
          %s822 = sshll.u32 %s811, 4
          %s823 = int_to_ptr.vmem [resolvable:$true] %s822
          %828 = dma.vmem_to_hbm [thread:$0]  %s823, 512, %s821, %s808, 128, 128, 8
        $region52: #{tpu_custom_call.1} parent=43 // pred_fallthru
          _
        // Predicated region
        $region53: #{tpu_custom_call.1} parent=43 // pred_check
          %p829 = pneg %p219
        $region54: #{tpu_custom_call.1} parent=43 // pred_check_branch
          %831 = sbr.rel (%p829) target = $region56
        $region55: #{tpu_custom_call.1} parent=43 // pred_region
          %s833 = ssub.s32 128, 128
          %834 = vsyncadd [#allocation6], %s833
          %s835 = smul.addr %s27, 128
          %s836 = scalar_lea.hbm %s7, %s835
          %s838 = sshll.u32 [#allocation5], 4
          %s839 = int_to_ptr.vmem [resolvable:$true] %s838
          %841 = dma.vmem_to_hbm [thread:$0]  %s839, 128, %s836, [#allocation6]
        $region56: #{tpu_custom_call.1} parent=43 // pred_fallthru
          _
        // Predicated region
        $region57: #{tpu_custom_call.1} parent=43 // pred_check
          %p842 = pneg %p219
        $region58: #{tpu_custom_call.1} parent=43 // pred_check_branch
          %844 = sbr.rel (%p842) target = $region60
        $region59: #{tpu_custom_call.1} parent=43 // pred_region
          %845 = dma.done [#allocation6], 128
        $region60: #{tpu_custom_call.1} parent=43 // pred_fallthru
          _
      $region44: #{tpu_custom_call.1} parent=5 // pred_fallthru
        _
      %p846 = scmp.le.s32.totalorder 2, %s18
      // Predicated region
      $region61: #{tpu_custom_call.1} parent=5 // pred_check
        %p847 = pneg %p846
      $region62: #{tpu_custom_call.1} parent=5 // pred_check_branch
        %849 = sbr.rel (%p847) target = $region64
      $region63: #{tpu_custom_call.1} parent=5 // pred_region
        %s850 = ssub.s32 %s18, 2
        // Predicated region
        $region65: #{tpu_custom_call.1} parent=63 // pred_check
          %p851 = pneg %p199
        $region66: #{tpu_custom_call.1} parent=63 // pred_check_branch
          %853 = sbr.rel (%p851) target = $region68
        $region67: #{tpu_custom_call.1} parent=63 // pred_region
          %s854 = sand.u32 %s184, 1
          %s855 = scalar_lea.sflag [#allocation4], %s854
          %s856 = sand.u32 %s184, 1
          %s857 = smul.addr %s856, 32
          %s858 = scalar_lea.vmem [#allocation3], %s857
          %859 = dma.done %s855, 512
        $region68: #{tpu_custom_call.1} parent=63 // pred_fallthru
          _
      $region64: #{tpu_custom_call.1} parent=5 // pred_fallthru
        _
    $region6: #{tpu_custom_call.1} parent=1 // loop_footer
      %s22 = sadd.s32 1, %s18
    $region7: #{tpu_custom_call.1} parent=1 // loop_footer_branch
      %17 = sbr.rel target = $region3
    $region8: #{tpu_custom_call.1} parent=1 // loop_exit
      _
    %860 = vsyncpa [#allocation4], 1
    %s861 = scalar_lea.sflag [#allocation4], 1
    %862 = vsyncpa %s861, 1
    %863 = vsyncpa [#allocation6], 1

</llo_original>
